<compile_context>
chip_gen: v6e
topology: v6e:2x2x1
jax: 0.10.0
libtpu: 0.0.40
codegen_flags: <defaults>
</compile_context>

<pallas_src>
import functools
import math

import jax
import jax.numpy as jnp
from jax.experimental import pallas as pl
from jax.experimental.pallas import tpu as pltpu


# ----------------------------------------------------------------------------
# Tile-size caps.  Chosen so the double-buffered VMEM footprint stays ~4 MiB,
# comfortably under every generation's default scoped-VMEM budget
# (v5e 16 MiB / v6e 32 MiB / v7x 32 MiB-of-64).  For big production shapes on
# v6e these can be raised (together with CompilerParams(vmem_limit_bytes=...)).
# ----------------------------------------------------------------------------
_TILE_M = 256      # rows per matmul tile
_TILE_N = 256      # output features per matmul tile (keep a multiple of 128)
_TILE_K = 512      # reduction tile
_LN_TILE_ROWS = 256


def _make_dropout_bits(key, shape):
    """Uniform 31-bit integers as int32 (so the in-kernel keep-test is a single
    signed integer compare).  Generation is fused by XLA with the bits draw."""
    bits = jax.random.bits(key, shape, dtype=jnp.uint32)
    return (bits >> 1).astype(jnp.int32)


def _drop_threshold(p):
    # keep  <=>  bits >= threshold ; P(keep) = 1 - p  (bits uniform on [0, 2^31))
    return int(round(p * (1 << 31)))


# ----------------------------- LayerNormalization ---------------------------
def _layernorm_kernel(x_ref, alpha_ref, bias_ref, o_ref, *, eps):
    x = x_ref[...].astype(jnp.float32)
    f = x.shape[-1]
    mean = jnp.mean(x, axis=-1, keepdims=True)
    xc = x - mean
    # torch.Tensor.std() is the *unbiased* estimator (N-1); eps is added to std.
    var = jnp.sum(xc * xc, axis=-1, keepdims=True) / (f - 1)
    inv = 1.0 / (jnp.sqrt(var) + eps)          # one divide per row, amortized over F lanes
    o_ref[...] = (alpha_ref[...] * (xc * inv) + bias_ref[...]).astype(o_ref.dtype)


def layer_norm(x2d, alpha, bias, *, eps=1e-6):
    m, f = x2d.shape
    tr = m if m <= _LN_TILE_ROWS else _LN_TILE_ROWS
    return pl.pallas_call(
        functools.partial(_layernorm_kernel, eps=eps),
        out_shape=jax.ShapeDtypeStruct((m, f), x2d.dtype),
        grid=(pl.cdiv(m, tr),),
        in_specs=[
            pl.BlockSpec((tr, f), lambda i: (i, 0)),
            pl.BlockSpec((1, f), lambda i: (0, 0)),
            pl.BlockSpec((1, f), lambda i: (0, 0)),
        ],
        out_specs=pl.BlockSpec((tr, f), lambda i: (i, 0)),
        compiler_params=pltpu.CompilerParams(dimension_semantics=("parallel",)),
    )(x2d, alpha.reshape(1, f), bias.reshape(1, f))


# ----------------- fused Linear (+ReLU, +dropout, +residual) ----------------
def _linear_kernel(*refs, activation, has_dropout, has_residual,
                   drop_threshold, inv_keep):
    x_ref, w_ref, b_ref = refs[0], refs[1], refs[2]
    idx = 3
    bits_ref = None
    res_ref = None
    if has_dropout:
        bits_ref = refs[idx]; idx += 1
    if has_residual:
        res_ref = refs[idx]; idx += 1
    o_ref = refs[idx]
    acc_ref = refs[idx + 1]

    @pl.when(pl.program_id(2) == 0)
    def _init():
        acc_ref[...] = jnp.zeros_like(acc_ref)

    acc_ref[...] += jnp.dot(x_ref[...], w_ref[...],
                            preferred_element_type=jnp.float32)

    @pl.when(pl.program_id(2) == pl.num_programs(2) - 1)
    def _epilogue():
        y = acc_ref[...] + b_ref[...].astype(jnp.float32)
        if activation == "relu":
            y = jnp.maximum(y, 0.0)
        if has_dropout:
            keep = bits_ref[...] >= jnp.int32(drop_threshold)
            y = jnp.where(keep, y * inv_keep, 0.0)     # inverted dropout
        if has_residual:
            y = y + res_ref[...].astype(jnp.float32)
        o_ref[...] = y.astype(o_ref.dtype)


def linear(x2d, w, b, *, activation=None, dropout_bits=None, dropout_p=0.0,
           residual=None):
    """y = act(x @ w + b); optionally dropout(y); optionally + residual."""
    m, k = x2d.shape
    k2, n = w.shape
    assert k == k2
    tm = m if m <= _TILE_M else _TILE_M
    tn = n if n <= _TILE_N else _TILE_N
    tk = k if k <= _TILE_K else _TILE_K
    assert k % tk == 0, "reduction axis must be a multiple of the K tile"

    has_dropout = dropout_bits is not None and dropout_p > 0.0
    has_residual = residual is not None

    args = [x2d, w, b.reshape(1, n)]
    in_specs = [
        pl.BlockSpec((tm, tk), lambda i, j, kk: (i, kk)),
        pl.BlockSpec((tk, tn), lambda i, j, kk: (kk, j)),
        pl.BlockSpec((1, tn), lambda i, j, kk: (0, j)),
    ]
    if has_dropout:
        args.append(dropout_bits)
        in_specs.append(pl.BlockSpec((tm, tn), lambda i, j, kk: (i, j)))
    if has_residual:
        args.append(residual)
        in_specs.append(pl.BlockSpec((tm, tn), lambda i, j, kk: (i, j)))

    # Alias the residual HBM buffer with the output (no extra [M,N] allocation).
    io_aliases = {len(args) - 1: 0} if has_residual else {}

    kernel = functools.partial(
        _linear_kernel,
        activation=activation,
        has_dropout=has_dropout,
        has_residual=has_residual,
        drop_threshold=_drop_threshold(dropout_p) if has_dropout else 0,
        inv_keep=(1.0 / (1.0 - dropout_p)) if has_dropout else 1.0)

    return pl.pallas_call(
        kernel,
        out_shape=jax.ShapeDtypeStruct((m, n), x2d.dtype),
        grid=(pl.cdiv(m, tm), pl.cdiv(n, tn), k // tk),
        in_specs=in_specs,
        out_specs=pl.BlockSpec((tm, tn), lambda i, j, kk: (i, j)),
        scratch_shapes=[pltpu.VMEM((tm, tn), jnp.float32)],
        input_output_aliases=io_aliases,
        compiler_params=pltpu.CompilerParams(
            dimension_semantics=("parallel", "parallel", "arbitrary")),
    )(*args)


# ------------------- scaled dot-product attention core ----------------------
def _attention_kernel(*refs, scale, has_dropout, drop_threshold, inv_keep):
    if has_dropout:
        q_ref, k_ref, v_ref, mask_ref, bits_ref, o_ref = refs
    else:
        q_ref, k_ref, v_ref, mask_ref, o_ref = refs
        bits_ref = None

    q = q_ref[0, 0].astype(jnp.float32)          # (TQ, dk)
    k = k_ref[0, 0].astype(jnp.float32)          # (Sk, dk)
    v = v_ref[0, 0].astype(jnp.float32)          # (Sk, dk)

    # scores = q @ k.T / sqrt(dk)   (contract the head dim, no transpose copy)
    s = jax.lax.dot_general(q, k, (((1,), (1,)), ((), ())),
                            preferred_element_type=jnp.float32) * scale
    m = mask_ref[0]                              # (TQ, Sk) int32
    s = jnp.where(m == 0, -1e30, s)              # masked_fill(mask == 0, -inf)

    s = s - jnp.max(s, axis=-1, keepdims=True)
    p = jnp.exp(s)
    probs = p / jnp.sum(p, axis=-1, keepdims=True)

    if has_dropout:                              # dropout on attention probs
        keep = bits_ref[0, 0] >= jnp.int32(drop_threshold)
        probs = jnp.where(keep, probs * inv_keep, 0.0)

    o = jnp.dot(probs, v, preferred_element_type=jnp.float32)
    o_ref[0, 0] = o.astype(o_ref.dtype)


def attention_core(q, k, v, mask, *, dropout_bits=None, dropout_p=0.0):
    """q,k,v: (B, H, S, dk); mask: (B, Sq, Sk) int32 (0 = masked)."""
    b, h, sq, dk = q.shape
    sk = k.shape[2]
    tq = sq if sq <= 256 else 256
    has_dropout = dropout_bits is not None and dropout_p > 0.0
    scale = 1.0 / math.sqrt(dk)

    args = [q, k, v, mask]
    in_specs = [
        pl.BlockSpec((1, 1, tq, dk), lambda bi, hi, qi: (bi, hi, qi, 0)),
        pl.BlockSpec((1, 1, sk, dk), lambda bi, hi, qi: (bi, hi, 0, 0)),
        pl.BlockSpec((1, 1, sk, dk), lambda bi, hi, qi: (bi, hi, 0, 0)),
        pl.BlockSpec((1, tq, sk), lambda bi, hi, qi: (bi, qi, 0)),
    ]
    if has_dropout:
        args.append(dropout_bits)
        in_specs.append(
            pl.BlockSpec((1, 1, tq, sk), lambda bi, hi, qi: (bi, hi, qi, 0)))

    kernel = functools.partial(
        _attention_kernel, scale=scale, has_dropout=has_dropout,
        drop_threshold=_drop_threshold(dropout_p) if has_dropout else 0,
        inv_keep=(1.0 / (1.0 - dropout_p)) if has_dropout else 1.0)

    return pl.pallas_call(
        kernel,
        out_shape=jax.ShapeDtypeStruct((b, h, sq, dk), q.dtype),
        grid=(b, h, pl.cdiv(sq, tq)),
        in_specs=in_specs,
        out_specs=pl.BlockSpec((1, 1, tq, dk), lambda bi, hi, qi: (bi, hi, qi, 0)),
        compiler_params=pltpu.CompilerParams(
            dimension_semantics=("parallel", "parallel", "parallel")),
    )(*args)


# -------------------------- multi-head attention ----------------------------
def multi_head_attention(x_q, x_kv, mask, p, *, heads,
                         attn_dropout_p, attn_key,
                         rc_dropout_bits, rc_dropout_p, residual):
    """Full MHA block; the output projection's epilogue fuses the
    ResidualConnection dropout + residual add.  Returns (rows, dim_model)."""
    b, sq, d = x_q.shape
    skv = x_kv.shape[1]
    dk = d // heads

    q = linear(x_q.reshape(b * sq, d), p["wq"], p["bq"])
    k = linear(x_kv.reshape(b * skv, d), p["wk"], p["bk"])
    v = linear(x_kv.reshape(b * skv, d), p["wv"], p["bv"])

    q = q.reshape(b, sq, heads, dk).transpose(0, 2, 1, 3)
    k = k.reshape(b, skv, heads, dk).transpose(0, 2, 1, 3)
    v = v.reshape(b, skv, heads, dk).transpose(0, 2, 1, 3)

    attn_bits = None
    if attn_dropout_p > 0.0:
        attn_bits = _make_dropout_bits(attn_key, (b, heads, sq, skv))

    ctx = attention_core(q, k, v, mask,
                         dropout_bits=attn_bits, dropout_p=attn_dropout_p)
    ctx = ctx.transpose(0, 2, 1, 3).reshape(b * sq, d)

    return linear(ctx, p["wo"], p["bo"],
                  dropout_bits=rc_dropout_bits, dropout_p=rc_dropout_p,
                  residual=residual)


# ------------------------------- DecoderBlock -------------------------------
def decoder_block_forward(x, encoder_output, src_mask, tgt_mask, params, *,
                          heads, dropout_p, training, rng_key):
    b, s, d = x.shape
    d_ff = params["ffn"]["w1"].shape[1]
    p_eff = dropout_p if training else 0.0
    k_attn0, k_rc0, k_attn1, k_rc1, k_ffn, k_rc2 = jax.random.split(rng_key, 6)

    def rc_bits(kk):
        return _make_dropout_bits(kk, (b * s, d)) if p_eff > 0.0 else None

    x2d = x.reshape(b * s, d)

    # --- residual connection 0: masked self-attention -----------------------
    n0 = layer_norm(x2d, params["rc"][0]["alpha"],
                    params["rc"][0]["bias"]).reshape(b, s, d)
    x2d = multi_head_attention(
        n0, n0, tgt_mask, params["attn"], heads=heads,
        attn_dropout_p=p_eff, attn_key=k_attn0,
        rc_dropout_bits=rc_bits(k_rc0), rc_dropout_p=p_eff, residual=x2d)

    # --- residual connection 1: "cross" attention ----------------------------
    # The reference forward() calls self.self_attention_block here as well; we
    # reproduce that literally (same projection weights for both attention steps).
    n1 = layer_norm(x2d, params["rc"][1]["alpha"],
                    params["rc"][1]["bias"]).reshape(b, s, d)
    x2d = multi_head_attention(
        n1, encoder_output, src_mask, params["attn"], heads=heads,
        attn_dropout_p=p_eff, attn_key=k_attn1,
        rc_dropout_bits=rc_bits(k_rc1), rc_dropout_p=p_eff, residual=x2d)

    # --- residual connection 2: feed-forward ---------------------------------
    n2 = layer_norm(x2d, params["rc"][2]["alpha"], params["rc"][2]["bias"])
    ffn_bits = (_make_dropout_bits(k_ffn, (b * s, d_ff))
                if p_eff > 0.0 else None)
    h = linear(n2, params["ffn"]["w1"], params["ffn"]["b1"], activation="relu",
               dropout_bits=ffn_bits, dropout_p=p_eff)
    x2d = linear(h, params["ffn"]["w2"], params["ffn"]["b2"],
                 dropout_bits=rc_bits(k_rc2), dropout_p=p_eff, residual=x2d)

    return x2d.reshape(b, s, d)


# ---------------------------- pure-JAX reference ----------------------------
def _ref_layer_norm(x, alpha, bias, eps=1e-6):
    mean = x.mean(axis=-1, keepdims=True)
    std = jnp.sqrt(jnp.sum((x - mean) ** 2, axis=-1, keepdims=True)
                   / (x.shape[-1] - 1))
    return alpha * (x - mean) / (std + eps) + bias


def _ref_mha(xq, xkv, mask, p, heads):
    b, sq, d = xq.shape
    skv = xkv.shape[1]
    dk = d // heads
    q = (xq @ p["wq"] + p["bq"]).reshape(b, sq, heads, dk).transpose(0, 2, 1, 3)
    k = (xkv @ p["wk"] + p["bk"]).reshape(b, skv, heads, dk).transpose(0, 2, 1, 3)
    v = (xkv @ p["wv"] + p["bv"]).reshape(b, skv, heads, dk).transpose(0, 2, 1, 3)
    s = jnp.einsum("bhqd,bhkd->bhqk", q, k) / math.sqrt(dk)
    s = jnp.where(mask[:, None, :, :] == 0, -1e30, s)
    a = jax.nn.softmax(s, axis=-1)
    ctx = jnp.einsum("bhqk,bhkd->bhqd", a, v).transpose(0, 2, 1, 3).reshape(b, sq, d)
    return ctx @ p["wo"] + p["bo"]


def _ref_decoder_block(x, enc, src_mask, tgt_mask, params, heads):
    rc = params["rc"]
    n0 = _ref_layer_norm(x, rc[0]["alpha"], rc[0]["bias"])
    x = x + _ref_mha(n0, n0, tgt_mask, params["attn"], heads)
    n1 = _ref_layer_norm(x, rc[1]["alpha"], rc[1]["bias"])
    x = x + _ref_mha(n1, enc, src_mask, params["attn"], heads)
    n2 = _ref_layer_norm(x, rc[2]["alpha"], rc[2]["bias"])
    ff = jnp.maximum(n2 @ params["ffn"]["w1"] + params["ffn"]["b1"], 0.0)
    x = x + (ff @ params["ffn"]["w2"] + params["ffn"]["b2"])
    return x


# ----------------------------------- main ------------------------------------
if __name__ == "__main__":
    B, S, SSRC = 2, 8, 8
    D, H, DFF = 128, 4, 256          # lane-dense feature dims (multiples of 128)
    DROPOUT_P = 0.1

    keys = jax.random.split(jax.random.PRNGKey(0), 16)

    x = jax.random.normal(keys[0], (B, S, D), jnp.float32)
    enc = jax.random.normal(keys[1], (B, SSRC, D), jnp.float32)

    def init_linear(kw, kb, din, dout):
        w = jax.random.normal(kw, (din, dout), jnp.float32) * 0.05
        b = jax.random.normal(kb, (dout,), jnp.float32) * 0.05
        return w, b

    wq, bq = init_linear(keys[2], keys[3], D, D)
    wk, bk = init_linear(keys[4], keys[5], D, D)
    wv, bv = init_linear(keys[6], keys[7], D, D)
    wo, bo = init_linear(keys[8], keys[9], D, D)
    w1, b1 = init_linear(keys[10], keys[11], D, DFF)
    w2, b2 = init_linear(keys[12], keys[13], DFF, D)

    params = {
        "attn": {"wq": wq, "bq": bq, "wk": wk, "bk": bk,
                 "wv": wv, "bv": bv, "wo": wo, "bo": bo},
        "ffn": {"w1": w1, "b1": b1, "w2": w2, "b2": b2},
        "rc": [{"alpha": jnp.ones((D,), jnp.float32),
                "bias": jnp.zeros((D,), jnp.float32)} for _ in range(3)],
    }

    tgt_mask = jnp.broadcast_to(
        jnp.tril(jnp.ones((S, S), jnp.int32))[None], (B, S, S))
    src_mask = jnp.ones((B, S, SSRC), jnp.int32).at[1, :, -1].set(0)

    # Eval mode (dropout disabled): must match the pure-JAX reference.
    out_eval = decoder_block_forward(
        x, enc, src_mask, tgt_mask, params, heads=H,
        dropout_p=DROPOUT_P, training=False, rng_key=keys[14])
    ref = _ref_decoder_block(x, enc, src_mask, tgt_mask, params, H)
    max_err = float(jnp.max(jnp.abs(out_eval - ref)))
    assert out_eval.shape == (B, S, D)
    assert jnp.allclose(out_eval, ref, atol=2e-2, rtol=2e-2), (
        f"mismatch vs reference, max abs err = {max_err}")

    # Training mode: deterministic dropout bits generated from jax.random and
    # consumed inside the fused matmul / attention kernels.
    out_train = decoder_block_forward(
        x, enc, src_mask, tgt_mask, params, heads=H,
        dropout_p=DROPOUT_P, training=True, rng_key=keys[15])
    assert out_train.shape == (B, S, D)
    assert bool(jnp.all(jnp.isfinite(out_train)))

    jax.block_until_ready((out_eval, out_train))
    print("KERNEL_OK")
</pallas_src>

<mosaic_0001>
module attributes {stable_mosaic.version = 11 : i64} {
  func.func @_layernorm_kernel(%arg0: i32, %arg1: memref<16x128xf32, #tpu.memory_space<vmem>>, %arg2: memref<1x128xf32, #tpu.memory_space<vmem>>, %arg3: memref<1x128xf32, #tpu.memory_space<vmem>>, %arg4: memref<16x128xf32, #tpu.memory_space<vmem>>) attributes {dimension_semantics = [#tpu.dimension_semantics<parallel>], iteration_bounds = array<i64: 1>, scalar_prefetch = 0 : i64, scratch_operands = 0 : i64, tpu.core_type = #tpu.core_type<tc>, window_params = [{transform_indices = @transform_0, window_bounds = array<i64: 16, 128>}, {pipeline_mode = #tpu.pipeline_mode<synchronous>, transform_indices = @transform_1, window_bounds = array<i64: 1, 128>}, {pipeline_mode = #tpu.pipeline_mode<synchronous>, transform_indices = @transform_2, window_bounds = array<i64: 1, 128>}, {transform_indices = @transform_3, window_bounds = array<i64: 16, 128>}]} {
    %c0 = arith.constant 0 : index
    %c0_0 = arith.constant 0 : index
    %0 = vector.load %arg1[%c0, %c0_0] : memref<16x128xf32, #tpu.memory_space<vmem>>, vector<16x128xf32>
    %cst = arith.constant dense<0.000000e+00> : vector<16xf32>
    %1 = vector.multi_reduction <add>, %0, %cst [1] : vector<16x128xf32> to vector<16xf32>
    %2 = vector.shape_cast %1 : vector<16xf32> to vector<16x1xf32>
    %cst_1 = arith.constant 1.280000e+02 : f32
    %3 = vector.broadcast %cst_1 : f32 to vector<16x1xf32>
    %4 = arith.divf %2, %3 : vector<16x1xf32>
    %5 = vector.broadcast %4 : vector<16x1xf32> to vector<16x128xf32>
    %6 = arith.subf %0, %5 : vector<16x128xf32>
    %7 = arith.mulf %6, %6 : vector<16x128xf32>
    %cst_2 = arith.constant dense<0.000000e+00> : vector<16xf32>
    %8 = vector.multi_reduction <add>, %7, %cst_2 [1] : vector<16x128xf32> to vector<16xf32>
    %9 = vector.shape_cast %8 : vector<16xf32> to vector<16x1xf32>
    %cst_3 = arith.constant 1.270000e+02 : f32
    %10 = vector.broadcast %cst_3 : f32 to vector<16x1xf32>
    %11 = arith.divf %9, %10 : vector<16x1xf32>
    %12 = math.sqrt %11 : vector<16x1xf32>
    %cst_4 = arith.constant 9.99999997E-7 : f32
    %13 = vector.broadcast %cst_4 : f32 to vector<16x1xf32>
    %14 = arith.addf %12, %13 : vector<16x1xf32>
    %cst_5 = arith.constant 1.000000e+00 : f32
    %15 = vector.broadcast %cst_5 : f32 to vector<16x1xf32>
    %16 = arith.divf %15, %14 : vector<16x1xf32>
    %c0_6 = arith.constant 0 : index
    %c0_7 = arith.constant 0 : index
    %17 = vector.load %arg2[%c0_6, %c0_7] : memref<1x128xf32, #tpu.memory_space<vmem>>, vector<1x128xf32>
    %18 = vector.broadcast %16 : vector<16x1xf32> to vector<16x128xf32>
    %19 = arith.mulf %6, %18 : vector<16x128xf32>
    %20 = vector.broadcast %17 : vector<1x128xf32> to vector<16x128xf32>
    %21 = arith.mulf %20, %19 : vector<16x128xf32>
    %c0_8 = arith.constant 0 : index
    %c0_9 = arith.constant 0 : index
    %22 = vector.load %arg3[%c0_8, %c0_9] : memref<1x128xf32, #tpu.memory_space<vmem>>, vector<1x128xf32>
    %23 = vector.broadcast %22 : vector<1x128xf32> to vector<16x128xf32>
    %24 = arith.addf %21, %23 : vector<16x128xf32>
    %c0_10 = arith.constant 0 : index
    %c0_11 = arith.constant 0 : index
    %25 = vector.load %arg4[%c0_10, %c0_11] : memref<16x128xf32, #tpu.memory_space<vmem>>, vector<16x128xf32>
    tpu.vector_store %arg4[%c0_10, %c0_11], %24 {strides = array<i32>} : memref<16x128xf32, #tpu.memory_space<vmem>>, vector<16x128xf32>,
    return
  }
  func.func @transform_0(%arg0: i32) -> (i32, i32) {
    %c0_i32 = arith.constant 0 : i32
    %c0_i32_0 = arith.constant 0 : i32
    return %arg0, %c0_i32 : i32, i32
  }
  func.func @transform_1(%arg0: i32) -> (i32, i32) {
    %c0_i32 = arith.constant 0 : i32
    %c0_i32_0 = arith.constant 0 : i32
    %c0_i32_1 = arith.constant 0 : i32
    return %c0_i32, %c0_i32_0 : i32, i32
  }
  func.func @transform_2(%arg0: i32) -> (i32, i32) {
    %c0_i32 = arith.constant 0 : i32
    %c0_i32_0 = arith.constant 0 : i32
    %c0_i32_1 = arith.constant 0 : i32
    return %c0_i32, %c0_i32_0 : i32, i32
  }
  func.func @transform_3(%arg0: i32) -> (i32, i32) {
    %c0_i32 = arith.constant 0 : i32
    %c0_i32_0 = arith.constant 0 : i32
    return %arg0, %c0_i32 : i32, i32
  }
}

</mosaic_0001>

<llo_original>
// kernel: tpu_custom_call.1
$region0: #{tpu_custom_call.1}
  #allocation0 [shape = 'u32[]', space=smem, size = 0x4, offset = 0x4, fixed_abs, tag = 'smem constant byte address 0x4 - core index']
  #allocation1 [shape = 'u32[144,128]{1,0:T(1,128)}', space=vmem, size = 0x12000, scoped, tag = 'internal scratch']
  %s0 = inlined_call_operand.hbm [shape: f32[16,128], index: 0, kind: input, shape index: {}]
  %s1 = inlined_call_operand.vmem [shape: f32[1,128], index: 1, kind: input, shape index: {}]
  %s2 = inlined_call_operand.vmem [shape: f32[1,128], index: 2, kind: input, shape index: {}]
  %s3 = inlined_call_operand.hbm [shape: f32[16,128], index: 3, kind: output, shape index: {}]
  %s4 = sld [smem:[#allocation0]]
  $region26: #{tpu_custom_call.1} parent=0
    _
  %s6 = ssub.s32 1, %s4
  %s7 = scalar_select 0, %s6, %s4
  $region1: #{tpu_custom_call.1} parent=0
    #allocation2 [shape = 'u8[8192]{0}', space=vmem, size = 0x2000, scoped, tag = 'input window, operand 0, single buffered']
    #allocation3 [shape = 's32[1]{0}', space=sflag, size = 0x4, scoped, tag = 'scoped memory for tpu_custom_call.1']
    #allocation4 [shape = 's32[1]{0}', space=sflag, size = 0x4, scoped, tag = 'scoped memory for tpu_custom_call.1']
    #allocation5 [shape = 'u8[8192]{0}', space=vmem, size = 0x2000, scoped, tag = 'output window, operand 0, single buffered']
    %8 = vsyncpa [#allocation3], 0
    %9 = vsyncpa [#allocation4], 0
    // Predicated region
    $region2: #{tpu_custom_call.1} parent=1 // pred_check
      _
    $region3: #{tpu_custom_call.1} parent=1 // pred_check_branch
      %11 = sbr.rel (0) target = $region5
    $region4: #{tpu_custom_call.1} parent=1 // pred_region
      %s13 = ssub.s32 256, 256
      %14 = vsyncadd [#allocation3], %s13
      %s15 = sshll.u32 [#allocation2], 4
      %s16 = int_to_ptr.vmem [resolvable:$true] %s15
      %21 = dma.hbm_to_vmem [thread:$0]  %s0, 256, %s16, [#allocation3], 128, 128, 8
    $region5: #{tpu_custom_call.1} parent=1 // pred_fallthru
      _
    // Predicated region
    $region6: #{tpu_custom_call.1} parent=1 // pred_check
      _
    $region7: #{tpu_custom_call.1} parent=1 // pred_check_branch
      %23 = sbr.rel (0) target = $region9
    $region8: #{tpu_custom_call.1} parent=1 // pred_region
      _
    $region9: #{tpu_custom_call.1} parent=1 // pred_fallthru
      _
    // Predicated region
    $region10: #{tpu_custom_call.1} parent=1 // pred_check
      _
    $region11: #{tpu_custom_call.1} parent=1 // pred_check_branch
      %25 = sbr.rel (0) target = $region13
    $region12: #{tpu_custom_call.1} parent=1 // pred_region
      _
    $region13: #{tpu_custom_call.1} parent=1 // pred_fallthru
      _
    // Predicated region
    $region14: #{tpu_custom_call.1} parent=1 // pred_check
      _
    $region15: #{tpu_custom_call.1} parent=1 // pred_check_branch
      %27 = sbr.rel (0) target = $region17
    $region16: #{tpu_custom_call.1} parent=1 // pred_region
      %28 = dma.done [#allocation3], 256
    $region17: #{tpu_custom_call.1} parent=1 // pred_fallthru
      _
    %v29 = vld [vmem:[#allocation2] sm:$0xff]
    %v30 = vld [vmem:[#allocation2 + $0x8] sm:$0xff]
    %31 = vadd.xlane.f32.xlu0 %v29
    %v32 = vpop.xlane.xlu0 %31
    %33 = vadd.xlane.f32.xlu0 %v30
    %v34 = vpop.xlane.xlu0 %33
    %v35 = vrcp.pop 128.0
    %v36 = vmul.f32 %v32, %v35
    %v37 = vmul.f32 %v34, %v35
    %v38 = vsub.f32 %v29, %v36
    %v39 = vsub.f32 %v30, %v37
    %v40 = vmul.f32 %v38, %v38
    %v41 = vmul.f32 %v39, %v39
    %42 = vadd.xlane.f32.xlu0 %v40
    %v43 = vpop.xlane.xlu0 %42
    %44 = vadd.xlane.f32.xlu0 %v41
    %v45 = vpop.xlane.xlu0 %44
    %v46 = vrcp.pop 127.0
    %v47 = vmul.f32 %v43, %v46
    %v48 = vmul.f32 %v45, %v46
    %v49 = vrsqrt.pop %v47
    %v50 = vmul.f32 %v47, %v49
    %vm51 = vcmp.eq.f32.partialorder %v47, inf
    %v52 = vsel %vm51, %v47, %v50
    %vm53 = vcmp.eq.f32.partialorder %v47, 0.0
    %v54 = vand.u32 %v47, 2147483648
    %v55 = vsel %vm53, %v54, %v52
    %v56 = vrsqrt.pop %v48
    %v57 = vmul.f32 %v48, %v56
    %vm58 = vcmp.eq.f32.partialorder %v48, inf
    %v59 = vsel %vm58, %v48, %v57
    %vm60 = vcmp.eq.f32.partialorder %v48, 0.0
    %v61 = vand.u32 %v48, 2147483648
    %v62 = vsel %vm60, %v61, %v59
    %v63 = vadd.f32 %v55, 1e-06
    %v64 = vadd.f32 %v62, 1e-06
    %v65 = vrcp.pop %v63
    %v66 = vmul.f32 1.0, %v65
    %v67 = vrcp.pop %v64
    %v68 = vmul.f32 1.0, %v67
    %v69 = vld [vmem:[%s1] sm:$0x1]
    %v70 = vmul.f32 %v38, %v66
    %v71 = vmul.f32 %v39, %v68
    %v73 = vlaneseq
    %v74 = vshrl.u32 %v73, 7
    %v75 = vsub.s32 0, %v74
    %v76 = vrot.slane %v69, %v75
    %v78 = vmul.f32 %v76, %v70
    %v79 = vmul.f32 %v76, %v71
    %v80 = vld [vmem:[%s2] sm:$0x1]
    %v82 = vlaneseq
    %v83 = vshrl.u32 %v82, 7
    %v84 = vsub.s32 0, %v83
    %v85 = vrot.slane %v80, %v84
    %v87 = vadd.f32 %v78, %v85
    %v88 = vadd.f32 %v79, %v85
    %89 = vst [vmem:[#allocation5] sm:$0xff] %v87
    %90 = vst [vmem:[#allocation5 + $0x8] sm:$0xff] %v88
    // Predicated region
    $region18: #{tpu_custom_call.1} parent=1 // pred_check
      _
    $region19: #{tpu_custom_call.1} parent=1 // pred_check_branch
      %92 = sbr.rel (0) target = $region21
    $region20: #{tpu_custom_call.1} parent=1 // pred_region
      %s94 = ssub.s32 256, 256
      %95 = vsyncadd [#allocation4], %s94
      %s96 = sshll.u32 [#allocation5], 4
      %s97 = int_to_ptr.vmem [resolvable:$true] %s96
      %102 = dma.vmem_to_hbm [thread:$0]  %s97, 256, %s3, [#allocation4], 128, 128, 8
    $region21: #{tpu_custom_call.1} parent=1 // pred_fallthru
      _
    // Predicated region
    $region22: #{tpu_custom_call.1} parent=1 // pred_check
      _
    $region23: #{tpu_custom_call.1} parent=1 // pred_check_branch
      %104 = sbr.rel (0) target = $region25
    $region24: #{tpu_custom_call.1} parent=1 // pred_region
      %105 = dma.done [#allocation4], 256
    $region25: #{tpu_custom_call.1} parent=1 // pred_fallthru
      _
    %106 = vsyncpa [#allocation3], 1
    %107 = vsyncpa [#allocation4], 1

</llo_original>
